<compile_context>
chip_gen: v7x
topology: tpu7x:2x2x1
jax: 0.10.0
libtpu: 0.0.40
codegen_flags: <defaults>
</compile_context>

<pallas_src>
import functools

import jax
import jax.numpy as jnp
from jax.experimental import pallas as pl
from jax.experimental.pallas import tpu as pltpu


def skip_block_kernel(x_ref, w1_ref, g1_ref, be1_ref,
                      w2_ref, g2_ref, be2_ref,
                      o_ref, *, K, left, eps):
    """Whole SkipBlock forward, fully VMEM-resident, NCL layout.

    x_ref  : (N, C, L)        input (lane axis = L)
    wX_ref : (K*Cin, Cout, 1) per-tap weight rows, row r = k*Cin + ci
    gX/beX : (C, 1)           BN gamma / beta
    o_ref  : (N, C, L)        output
    """
    N, C, L = x_ref.shape
    right = (K - 1) - left
    inv_count = 1.0 / float(N * L)

    def conv(x, w_ref):
        # 'same' 1-D conv as K*Cin broadcasted per-tap FMAs on the VPU
        # (per-tap accumulation; no im2col slab, no MXU at tiny C).
        y = jnp.zeros((N, C, L), jnp.float32)
        for ci in range(C):                                # static unroll
            pieces = []
            if left > 0:
                pieces.append(jnp.zeros((N, left), jnp.float32))
            pieces.append(x[:, ci, :])
            if right > 0:
                pieces.append(jnp.zeros((N, right), jnp.float32))
            xp = (jnp.concatenate(pieces, axis=1)
                  if len(pieces) > 1 else pieces[0])       # (N, L + K - 1)
            for k in range(K):
                tap = xp[:, k:k + L]                       # (N, L) static shift
                w_kci = w_ref[k * C + ci].astype(jnp.float32)   # (Cout, 1)
                y = y + w_kci[None] * tap[:, None, :]      # (N, C, L) FMA
        return y

    def batchnorm(y, g_ref, be_ref):
        # training-mode BN, two-pass (subtract-mean) biased variance in f32.
        s = jnp.sum(jnp.sum(y, axis=0), axis=1, keepdims=True)      # (C, 1)
        mean = (s * inv_count)[None]                                # (1, C, 1)
        d = y - mean
        var = jnp.sum(jnp.sum(d * d, axis=0), axis=1,
                      keepdims=True) * inv_count                    # (C, 1)
        scale = g_ref[...].astype(jnp.float32) * jax.lax.rsqrt(var + eps)
        return d * scale[None] + be_ref[...].astype(jnp.float32)[None]

    x = x_ref[...].astype(jnp.float32)
    # conv1 -> BN1 -> ReLU   (conv bias omitted: cancelled by BN mean-subtract)
    a1 = jnp.maximum(batchnorm(conv(x, w1_ref), g1_ref, be1_ref), 0.0)
    # conv2 -> BN2
    y2 = batchnorm(conv(a1, w2_ref), g2_ref, be2_ref)
    # residual add + ReLU
    o_ref[...] = jnp.maximum(y2 + x, 0.0).astype(o_ref.dtype)


def skip_block_forward(x_ncl, params, *, kernel_size, eps=1e-5):
    """x_ncl: (N, C, L) float32, PyTorch Conv1d layout (no wrapper transposes)."""
    N, C, L = x_ncl.shape
    K = kernel_size
    left = (K - 1) // 2                       # torch padding='same' split

    # torch Conv1d weight (Cout, Cin, K) -> (K*Cin, Cout, 1), row = k*Cin + ci.
    # NOTE: conv biases b1/b2 are intentionally NOT passed: training-mode BN
    # cancels them exactly.
    def tap_rows(w):
        return (jnp.transpose(w, (2, 1, 0))
                .reshape(K * C, C, 1).astype(jnp.float32))

    col = lambda v: v.astype(jnp.float32).reshape(C, 1)

    # Generation-aware VMEM budget (v7x: 64 MiB/core; v5e/v6e: 128 MiB).
    try:
        phys_vmem = int(pltpu.get_tpu_info().vmem_capacity_bytes)
    except Exception:
        phys_vmem = 64 * 1024 * 1024          # conservative fallback
    f32 = 4
    act_bytes = N * C * L * f32
    weight_bytes = 2 * (K * C) * C * f32 + 4 * C * f32
    vmem_estimate = 6 * act_bytes + weight_bytes + (1 << 20)
    vmem_limit = int(min(phys_vmem // 2,
                         max(16 * 1024 * 1024, 2 * vmem_estimate)))

    conv_flops = 2 * (2 * N * C * L * K * C)  # two convs, FMA = 2 flops
    bn_flops = 2 * (8 * N * C * L)
    cost = pl.CostEstimate(flops=conv_flops + bn_flops + 2 * N * C * L,
                           transcendentals=2 * C,
                           bytes_accessed=2 * act_bytes + weight_bytes)

    kern = functools.partial(skip_block_kernel, K=K, left=left, eps=eps)
    return pl.pallas_call(
        kern,
        out_shape=jax.ShapeDtypeStruct((N, C, L), jnp.float32),
        in_specs=[pl.BlockSpec(memory_space=pltpu.MemorySpace.VMEM)] * 7,
        out_specs=pl.BlockSpec(memory_space=pltpu.MemorySpace.VMEM),
        compiler_params=pltpu.CompilerParams(vmem_limit_bytes=vmem_limit),
        cost_estimate=cost,
    )(x_ncl.astype(jnp.float32),
      tap_rows(params["w1"]), col(params["g1"]), col(params["be1"]),
      tap_rows(params["w2"]), col(params["g2"]), col(params["be2"]))


def ref_forward(x, p, kernel_size, eps=1e-5):
    """Pure-JAX reference (independent conv lowering, WITH conv biases)."""
    K = kernel_size
    left = (K - 1) // 2
    right = (K - 1) - left

    def conv(x, w, b):
        y = jax.lax.conv_general_dilated(
            x, w, window_strides=(1,), padding=[(left, right)],
            dimension_numbers=("NCH", "OIH", "NCH"))
        return y + b[None, :, None]

    def bn(x, g, be):
        m = jnp.mean(x, axis=(0, 2), keepdims=True)
        v = jnp.mean((x - m) ** 2, axis=(0, 2), keepdims=True)
        return (x - m) * jax.lax.rsqrt(v + eps) * g[None, :, None] + be[None, :, None]

    y = jax.nn.relu(bn(conv(x, p["w1"], p["b1"]), p["g1"], p["be1"]))
    y = bn(conv(y, p["w2"], p["b2"]), p["g2"], p["be2"])
    return jax.nn.relu(y + x)


if __name__ == "__main__":
    N, C, L, K = 2, 4, 16, 3

    key = jax.random.PRNGKey(0)
    keys = jax.random.split(key, 9)
    params = {
        "w1": 0.3 * jax.random.normal(keys[0], (C, C, K), jnp.float32),
        "b1": 0.1 * jax.random.normal(keys[1], (C,), jnp.float32),
        "g1": 1.0 + 0.1 * jax.random.normal(keys[2], (C,), jnp.float32),
        "be1": 0.1 * jax.random.normal(keys[3], (C,), jnp.float32),
        "w2": 0.3 * jax.random.normal(keys[4], (C, C, K), jnp.float32),
        "b2": 0.1 * jax.random.normal(keys[5], (C,), jnp.float32),
        "g2": 1.0 + 0.1 * jax.random.normal(keys[6], (C,), jnp.float32),
        "be2": 0.1 * jax.random.normal(keys[7], (C,), jnp.float32),
    }
    x = jax.random.normal(keys[8], (N, C, L), jnp.float32)

    out = jax.block_until_ready(skip_block_forward(x, params, kernel_size=K))
    ref = jax.block_until_ready(ref_forward(x, params, K))

    assert out.shape == (N, C, L)
    assert jnp.allclose(out, ref, atol=1e-4, rtol=1e-4), (
        f"max abs err {jnp.max(jnp.abs(out - ref))}")

    print("KERNEL_OK")
</pallas_src>

<mosaic_0001>
module attributes {stable_mosaic.version = 11 : i64} {
  func.func @skip_block_kernel(%arg0: memref<2x4x16xf32, #tpu.memory_space<vmem>>, %arg1: memref<12x4x1xf32, #tpu.memory_space<vmem>>, %arg2: memref<4x1xf32, #tpu.memory_space<vmem>>, %arg3: memref<4x1xf32, #tpu.memory_space<vmem>>, %arg4: memref<12x4x1xf32, #tpu.memory_space<vmem>>, %arg5: memref<4x1xf32, #tpu.memory_space<vmem>>, %arg6: memref<4x1xf32, #tpu.memory_space<vmem>>, %arg7: memref<2x4x16xf32, #tpu.memory_space<vmem>>) attributes {dimension_semantics = [], scalar_prefetch = 0 : i64, scratch_operands = 0 : i64, tpu.core_type = #tpu.core_type<tc>} {
    %c0 = arith.constant 0 : index
    %c0_0 = arith.constant 0 : index
    %c0_1 = arith.constant 0 : index
    %0 = vector.load %arg0[%c0, %c0_0, %c0_1] : memref<2x4x16xf32, #tpu.memory_space<vmem>>, vector<2x4x16xf32>
    %cst = arith.constant 0.000000e+00 : f32
    %1 = vector.broadcast %cst : f32 to vector<2x4x16xf32>
    %cst_2 = arith.constant 0.000000e+00 : f32
    %2 = vector.broadcast %cst_2 : f32 to vector<2x1xf32>
    %3 = vector.extract_strided_slice %0 {offsets = [0, 0, 0], sizes = [2, 1, 16], strides = [1, 1, 1]} : vector<2x4x16xf32> to vector<2x1x16xf32>
    %4 = vector.shape_cast %3 : vector<2x1x16xf32> to vector<2x16xf32>
    %cst_3 = arith.constant 0.000000e+00 : f32
    %5 = vector.broadcast %cst_3 : f32 to vector<2x1xf32>
    %6 = tpu.concatenate %2, %4, %5 in 1 : vector<2x1xf32>, vector<2x16xf32>, vector<2x1xf32> -> vector<2x18xf32>
    %7 = vector.extract_strided_slice %6 {offsets = [0, 0], sizes = [2, 16], strides = [1, 1]} : vector<2x18xf32> to vector<2x16xf32>
    %c0_4 = arith.constant 0 : index
    %c0_5 = arith.constant 0 : index
    %c0_6 = arith.constant 0 : index
    %8 = vector.load %arg1[%c0_4, %c0_5, %c0_6] : memref<12x4x1xf32, #tpu.memory_space<vmem>>, vector<1x4x1xf32>
    %9 = vector.shape_cast %8 : vector<1x4x1xf32> to vector<4x1xf32>
    %10 = vector.shape_cast %9 : vector<4x1xf32> to vector<1x4x1xf32>
    %11 = vector.shape_cast %7 : vector<2x16xf32> to vector<2x1x16xf32>
    %12 = vector.broadcast %10 : vector<1x4x1xf32> to vector<2x4x16xf32>
    %13 = vector.broadcast %11 : vector<2x1x16xf32> to vector<2x4x16xf32>
    %14 = arith.mulf %12, %13 : vector<2x4x16xf32>
    %15 = arith.addf %1, %14 : vector<2x4x16xf32>
    %16 = vector.extract_strided_slice %6 {offsets = [0, 1], sizes = [2, 16], strides = [1, 1]} : vector<2x18xf32> to vector<2x16xf32>
    %c4 = arith.constant 4 : index
    %c0_7 = arith.constant 0 : index
    %c0_8 = arith.constant 0 : index
    %17 = vector.load %arg1[%c4, %c0_7, %c0_8] : memref<12x4x1xf32, #tpu.memory_space<vmem>>, vector<1x4x1xf32>
    %18 = vector.shape_cast %17 : vector<1x4x1xf32> to vector<4x1xf32>
    %19 = vector.shape_cast %18 : vector<4x1xf32> to vector<1x4x1xf32>
    %20 = vector.shape_cast %16 : vector<2x16xf32> to vector<2x1x16xf32>
    %21 = vector.broadcast %19 : vector<1x4x1xf32> to vector<2x4x16xf32>
    %22 = vector.broadcast %20 : vector<2x1x16xf32> to vector<2x4x16xf32>
    %23 = arith.mulf %21, %22 : vector<2x4x16xf32>
    %24 = arith.addf %15, %23 : vector<2x4x16xf32>
    %25 = vector.extract_strided_slice %6 {offsets = [0, 2], sizes = [2, 16], strides = [1, 1]} : vector<2x18xf32> to vector<2x16xf32>
    %c8 = arith.constant 8 : index
    %c0_9 = arith.constant 0 : index
    %c0_10 = arith.constant 0 : index
    %26 = vector.load %arg1[%c8, %c0_9, %c0_10] : memref<12x4x1xf32, #tpu.memory_space<vmem>>, vector<1x4x1xf32>
    %27 = vector.shape_cast %26 : vector<1x4x1xf32> to vector<4x1xf32>
    %28 = vector.shape_cast %27 : vector<4x1xf32> to vector<1x4x1xf32>
    %29 = vector.shape_cast %25 : vector<2x16xf32> to vector<2x1x16xf32>
    %30 = vector.broadcast %28 : vector<1x4x1xf32> to vector<2x4x16xf32>
    %31 = vector.broadcast %29 : vector<2x1x16xf32> to vector<2x4x16xf32>
    %32 = arith.mulf %30, %31 : vector<2x4x16xf32>
    %33 = arith.addf %24, %32 : vector<2x4x16xf32>
    %cst_11 = arith.constant 0.000000e+00 : f32
    %34 = vector.broadcast %cst_11 : f32 to vector<2x1xf32>
    %35 = vector.extract_strided_slice %0 {offsets = [0, 1, 0], sizes = [2, 1, 16], strides = [1, 1, 1]} : vector<2x4x16xf32> to vector<2x1x16xf32>
    %36 = vector.shape_cast %35 : vector<2x1x16xf32> to vector<2x16xf32>
    %cst_12 = arith.constant 0.000000e+00 : f32
    %37 = vector.broadcast %cst_12 : f32 to vector<2x1xf32>
    %38 = tpu.concatenate %34, %36, %37 in 1 : vector<2x1xf32>, vector<2x16xf32>, vector<2x1xf32> -> vector<2x18xf32>
    %39 = vector.extract_strided_slice %38 {offsets = [0, 0], sizes = [2, 16], strides = [1, 1]} : vector<2x18xf32> to vector<2x16xf32>
    %c1 = arith.constant 1 : index
    %c0_13 = arith.constant 0 : index
    %c0_14 = arith.constant 0 : index
    %40 = vector.load %arg1[%c1, %c0_13, %c0_14] : memref<12x4x1xf32, #tpu.memory_space<vmem>>, vector<1x4x1xf32>
    %41 = vector.shape_cast %40 : vector<1x4x1xf32> to vector<4x1xf32>
    %42 = vector.shape_cast %41 : vector<4x1xf32> to vector<1x4x1xf32>
    %43 = vector.shape_cast %39 : vector<2x16xf32> to vector<2x1x16xf32>
    %44 = vector.broadcast %42 : vector<1x4x1xf32> to vector<2x4x16xf32>
    %45 = vector.broadcast %43 : vector<2x1x16xf32> to vector<2x4x16xf32>
    %46 = arith.mulf %44, %45 : vector<2x4x16xf32>
    %47 = arith.addf %33, %46 : vector<2x4x16xf32>
    %48 = vector.extract_strided_slice %38 {offsets = [0, 1], sizes = [2, 16], strides = [1, 1]} : vector<2x18xf32> to vector<2x16xf32>
    %c5 = arith.constant 5 : index
    %c0_15 = arith.constant 0 : index
    %c0_16 = arith.constant 0 : index
    %49 = vector.load %arg1[%c5, %c0_15, %c0_16] : memref<12x4x1xf32, #tpu.memory_space<vmem>>, vector<1x4x1xf32>
    %50 = vector.shape_cast %49 : vector<1x4x1xf32> to vector<4x1xf32>
    %51 = vector.shape_cast %50 : vector<4x1xf32> to vector<1x4x1xf32>
    %52 = vector.shape_cast %48 : vector<2x16xf32> to vector<2x1x16xf32>
    %53 = vector.broadcast %51 : vector<1x4x1xf32> to vector<2x4x16xf32>
    %54 = vector.broadcast %52 : vector<2x1x16xf32> to vector<2x4x16xf32>
    %55 = arith.mulf %53, %54 : vector<2x4x16xf32>
    %56 = arith.addf %47, %55 : vector<2x4x16xf32>
    %57 = vector.extract_strided_slice %38 {offsets = [0, 2], sizes = [2, 16], strides = [1, 1]} : vector<2x18xf32> to vector<2x16xf32>
    %c9 = arith.constant 9 : index
    %c0_17 = arith.constant 0 : index
    %c0_18 = arith.constant 0 : index
    %58 = vector.load %arg1[%c9, %c0_17, %c0_18] : memref<12x4x1xf32, #tpu.memory_space<vmem>>, vector<1x4x1xf32>
    %59 = vector.shape_cast %58 : vector<1x4x1xf32> to vector<4x1xf32>
    %60 = vector.shape_cast %59 : vector<4x1xf32> to vector<1x4x1xf32>
    %61 = vector.shape_cast %57 : vector<2x16xf32> to vector<2x1x16xf32>
    %62 = vector.broadcast %60 : vector<1x4x1xf32> to vector<2x4x16xf32>
    %63 = vector.broadcast %61 : vector<2x1x16xf32> to vector<2x4x16xf32>
    %64 = arith.mulf %62, %63 : vector<2x4x16xf32>
    %65 = arith.addf %56, %64 : vector<2x4x16xf32>
    %cst_19 = arith.constant 0.000000e+00 : f32
    %66 = vector.broadcast %cst_19 : f32 to vector<2x1xf32>
    %67 = vector.extract_strided_slice %0 {offsets = [0, 2, 0], sizes = [2, 1, 16], strides = [1, 1, 1]} : vector<2x4x16xf32> to vector<2x1x16xf32>
    %68 = vector.shape_cast %67 : vector<2x1x16xf32> to vector<2x16xf32>
    %cst_20 = arith.constant 0.000000e+00 : f32
    %69 = vector.broadcast %cst_20 : f32 to vector<2x1xf32>
    %70 = tpu.concatenate %66, %68, %69 in 1 : vector<2x1xf32>, vector<2x16xf32>, vector<2x1xf32> -> vector<2x18xf32>
    %71 = vector.extract_strided_slice %70 {offsets = [0, 0], sizes = [2, 16], strides = [1, 1]} : vector<2x18xf32> to vector<2x16xf32>
    %c2 = arith.constant 2 : index
    %c0_21 = arith.constant 0 : index
    %c0_22 = arith.constant 0 : index
    %72 = vector.load %arg1[%c2, %c0_21, %c0_22] : memref<12x4x1xf32, #tpu.memory_space<vmem>>, vector<1x4x1xf32>
    %73 = vector.shape_cast %72 : vector<1x4x1xf32> to vector<4x1xf32>
    %74 = vector.shape_cast %73 : vector<4x1xf32> to vector<1x4x1xf32>
    %75 = vector.shape_cast %71 : vector<2x16xf32> to vector<2x1x16xf32>
    %76 = vector.broadcast %74 : vector<1x4x1xf32> to vector<2x4x16xf32>
    %77 = vector.broadcast %75 : vector<2x1x16xf32> to vector<2x4x16xf32>
    %78 = arith.mulf %76, %77 : vector<2x4x16xf32>
    %79 = arith.addf %65, %78 : vector<2x4x16xf32>
    %80 = vector.extract_strided_slice %70 {offsets = [0, 1], sizes = [2, 16], strides = [1, 1]} : vector<2x18xf32> to vector<2x16xf32>
    %c6 = arith.constant 6 : index
    %c0_23 = arith.constant 0 : index
    %c0_24 = arith.constant 0 : index
    %81 = vector.load %arg1[%c6, %c0_23, %c0_24] : memref<12x4x1xf32, #tpu.memory_space<vmem>>, vector<1x4x1xf32>
    %82 = vector.shape_cast %81 : vector<1x4x1xf32> to vector<4x1xf32>
    %83 = vector.shape_cast %82 : vector<4x1xf32> to vector<1x4x1xf32>
    %84 = vector.shape_cast %80 : vector<2x16xf32> to vector<2x1x16xf32>
    %85 = vector.broadcast %83 : vector<1x4x1xf32> to vector<2x4x16xf32>
    %86 = vector.broadcast %84 : vector<2x1x16xf32> to vector<2x4x16xf32>
    %87 = arith.mulf %85, %86 : vector<2x4x16xf32>
    %88 = arith.addf %79, %87 : vector<2x4x16xf32>
    %89 = vector.extract_strided_slice %70 {offsets = [0, 2], sizes = [2, 16], strides = [1, 1]} : vector<2x18xf32> to vector<2x16xf32>
    %c10 = arith.constant 10 : index
    %c0_25 = arith.constant 0 : index
    %c0_26 = arith.constant 0 : index
    %90 = vector.load %arg1[%c10, %c0_25, %c0_26] : memref<12x4x1xf32, #tpu.memory_space<vmem>>, vector<1x4x1xf32>
    %91 = vector.shape_cast %90 : vector<1x4x1xf32> to vector<4x1xf32>
    %92 = vector.shape_cast %91 : vector<4x1xf32> to vector<1x4x1xf32>
    %93 = vector.shape_cast %89 : vector<2x16xf32> to vector<2x1x16xf32>
    %94 = vector.broadcast %92 : vector<1x4x1xf32> to vector<2x4x16xf32>
    %95 = vector.broadcast %93 : vector<2x1x16xf32> to vector<2x4x16xf32>
    %96 = arith.mulf %94, %95 : vector<2x4x16xf32>
    %97 = arith.addf %88, %96 : vector<2x4x16xf32>
    %cst_27 = arith.constant 0.000000e+00 : f32
    %98 = vector.broadcast %cst_27 : f32 to vector<2x1xf32>
    %99 = vector.extract_strided_slice %0 {offsets = [0, 3, 0], sizes = [2, 1, 16], strides = [1, 1, 1]} : vector<2x4x16xf32> to vector<2x1x16xf32>
    %100 = vector.shape_cast %99 : vector<2x1x16xf32> to vector<2x16xf32>
    %cst_28 = arith.constant 0.000000e+00 : f32
    %101 = vector.broadcast %cst_28 : f32 to vector<2x1xf32>
    %102 = tpu.concatenate %98, %100, %101 in 1 : vector<2x1xf32>, vector<2x16xf32>, vector<2x1xf32> -> vector<2x18xf32>
    %103 = vector.extract_strided_slice %102 {offsets = [0, 0], sizes = [2, 16], strides = [1, 1]} : vector<2x18xf32> to vector<2x16xf32>
    %c3 = arith.constant 3 : index
    %c0_29 = arith.constant 0 : index
    %c0_30 = arith.constant 0 : index
    %104 = vector.load %arg1[%c3, %c0_29, %c0_30] : memref<12x4x1xf32, #tpu.memory_space<vmem>>, vector<1x4x1xf32>
    %105 = vector.shape_cast %104 : vector<1x4x1xf32> to vector<4x1xf32>
    %106 = vector.shape_cast %105 : vector<4x1xf32> to vector<1x4x1xf32>
    %107 = vector.shape_cast %103 : vector<2x16xf32> to vector<2x1x16xf32>
    %108 = vector.broadcast %106 : vector<1x4x1xf32> to vector<2x4x16xf32>
    %109 = vector.broadcast %107 : vector<2x1x16xf32> to vector<2x4x16xf32>
    %110 = arith.mulf %108, %109 : vector<2x4x16xf32>
    %111 = arith.addf %97, %110 : vector<2x4x16xf32>
    %112 = vector.extract_strided_slice %102 {offsets = [0, 1], sizes = [2, 16], strides = [1, 1]} : vector<2x18xf32> to vector<2x16xf32>
    %c7 = arith.constant 7 : index
    %c0_31 = arith.constant 0 : index
    %c0_32 = arith.constant 0 : index
    %113 = vector.load %arg1[%c7, %c0_31, %c0_32] : memref<12x4x1xf32, #tpu.memory_space<vmem>>, vector<1x4x1xf32>
    %114 = vector.shape_cast %113 : vector<1x4x1xf32> to vector<4x1xf32>
    %115 = vector.shape_cast %114 : vector<4x1xf32> to vector<1x4x1xf32>
    %116 = vector.shape_cast %112 : vector<2x16xf32> to vector<2x1x16xf32>
    %117 = vector.broadcast %115 : vector<1x4x1xf32> to vector<2x4x16xf32>
    %118 = vector.broadcast %116 : vector<2x1x16xf32> to vector<2x4x16xf32>
    %119 = arith.mulf %117, %118 : vector<2x4x16xf32>
    %120 = arith.addf %111, %119 : vector<2x4x16xf32>
    %121 = vector.extract_strided_slice %102 {offsets = [0, 2], sizes = [2, 16], strides = [1, 1]} : vector<2x18xf32> to vector<2x16xf32>
    %c11 = arith.constant 11 : index
    %c0_33 = arith.constant 0 : index
    %c0_34 = arith.constant 0 : index
    %122 = vector.load %arg1[%c11, %c0_33, %c0_34] : memref<12x4x1xf32, #tpu.memory_space<vmem>>, vector<1x4x1xf32>
    %123 = vector.shape_cast %122 : vector<1x4x1xf32> to vector<4x1xf32>
    %124 = vector.shape_cast %123 : vector<4x1xf32> to vector<1x4x1xf32>
    %125 = vector.shape_cast %121 : vector<2x16xf32> to vector<2x1x16xf32>
    %126 = vector.broadcast %124 : vector<1x4x1xf32> to vector<2x4x16xf32>
    %127 = vector.broadcast %125 : vector<2x1x16xf32> to vector<2x4x16xf32>
    %128 = arith.mulf %126, %127 : vector<2x4x16xf32>
    %129 = arith.addf %120, %128 : vector<2x4x16xf32>
    %cst_35 = arith.constant dense<0.000000e+00> : vector<4x16xf32>
    %130 = vector.multi_reduction <add>, %129, %cst_35 [0] : vector<2x4x16xf32> to vector<4x16xf32>
    %cst_36 = arith.constant dense<0.000000e+00> : vector<4xf32>
    %131 = vector.multi_reduction <add>, %130, %cst_36 [1] : vector<4x16xf32> to vector<4xf32>
    %132 = vector.shape_cast %131 : vector<4xf32> to vector<4x1xf32>
    %cst_37 = arith.constant 3.125000e-02 : f32
    %133 = vector.broadcast %cst_37 : f32 to vector<4x1xf32>
    %134 = arith.mulf %132, %133 : vector<4x1xf32>
    %135 = vector.shape_cast %134 : vector<4x1xf32> to vector<1x4x1xf32>
    %136 = vector.broadcast %135 : vector<1x4x1xf32> to vector<2x4x16xf32>
    %137 = arith.subf %129, %136 : vector<2x4x16xf32>
    %138 = arith.mulf %137, %137 : vector<2x4x16xf32>
    %cst_38 = arith.constant dense<0.000000e+00> : vector<4x16xf32>
    %139 = vector.multi_reduction <add>, %138, %cst_38 [0] : vector<2x4x16xf32> to vector<4x16xf32>
    %cst_39 = arith.constant dense<0.000000e+00> : vector<4xf32>
    %140 = vector.multi_reduction <add>, %139, %cst_39 [1] : vector<4x16xf32> to vector<4xf32>
    %141 = vector.shape_cast %140 : vector<4xf32> to vector<4x1xf32>
    %cst_40 = arith.constant 3.125000e-02 : f32
    %142 = vector.broadcast %cst_40 : f32 to vector<4x1xf32>
    %143 = arith.mulf %141, %142 : vector<4x1xf32>
    %c0_41 = arith.constant 0 : index
    %c0_42 = arith.constant 0 : index
    %144 = vector.load %arg2[%c0_41, %c0_42] : memref<4x1xf32, #tpu.memory_space<vmem>>, vector<4x1xf32>
    %cst_43 = arith.constant 9.99999974E-6 : f32
    %145 = vector.broadcast %cst_43 : f32 to vector<4x1xf32>
    %146 = arith.addf %143, %145 : vector<4x1xf32>
    %147 = math.rsqrt %146 : vector<4x1xf32>
    %148 = arith.mulf %144, %147 : vector<4x1xf32>
    %149 = vector.shape_cast %148 : vector<4x1xf32> to vector<1x4x1xf32>
    %150 = vector.broadcast %149 : vector<1x4x1xf32> to vector<2x4x16xf32>
    %151 = arith.mulf %137, %150 : vector<2x4x16xf32>
    %c0_44 = arith.constant 0 : index
    %c0_45 = arith.constant 0 : index
    %152 = vector.load %arg3[%c0_44, %c0_45] : memref<4x1xf32, #tpu.memory_space<vmem>>, vector<4x1xf32>
    %153 = vector.shape_cast %152 : vector<4x1xf32> to vector<1x4x1xf32>
    %154 = vector.broadcast %153 : vector<1x4x1xf32> to vector<2x4x16xf32>
    %155 = arith.addf %151, %154 : vector<2x4x16xf32>
    %cst_46 = arith.constant 0.000000e+00 : f32
    %156 = vector.broadcast %cst_46 : f32 to vector<2x4x16xf32>
    %157 = arith.maximumf %155, %156 : vector<2x4x16xf32>
    %cst_47 = arith.constant 0.000000e+00 : f32
    %158 = vector.broadcast %cst_47 : f32 to vector<2x4x16xf32>
    %cst_48 = arith.constant 0.000000e+00 : f32
    %159 = vector.broadcast %cst_48 : f32 to vector<2x1xf32>
    %160 = vector.extract_strided_slice %157 {offsets = [0, 0, 0], sizes = [2, 1, 16], strides = [1, 1, 1]} : vector<2x4x16xf32> to vector<2x1x16xf32>
    %161 = vector.shape_cast %160 : vector<2x1x16xf32> to vector<2x16xf32>
    %cst_49 = arith.constant 0.000000e+00 : f32
    %162 = vector.broadcast %cst_49 : f32 to vector<2x1xf32>
    %163 = tpu.concatenate %159, %161, %162 in 1 : vector<2x1xf32>, vector<2x16xf32>, vector<2x1xf32> -> vector<2x18xf32>
    %164 = vector.extract_strided_slice %163 {offsets = [0, 0], sizes = [2, 16], strides = [1, 1]} : vector<2x18xf32> to vector<2x16xf32>
    %c0_50 = arith.constant 0 : index
    %c0_51 = arith.constant 0 : index
    %c0_52 = arith.constant 0 : index
    %165 = vector.load %arg4[%c0_50, %c0_51, %c0_52] : memref<12x4x1xf32, #tpu.memory_space<vmem>>, vector<1x4x1xf32>
    %166 = vector.shape_cast %165 : vector<1x4x1xf32> to vector<4x1xf32>
    %167 = vector.shape_cast %166 : vector<4x1xf32> to vector<1x4x1xf32>
    %168 = vector.shape_cast %164 : vector<2x16xf32> to vector<2x1x16xf32>
    %169 = vector.broadcast %167 : vector<1x4x1xf32> to vector<2x4x16xf32>
    %170 = vector.broadcast %168 : vector<2x1x16xf32> to vector<2x4x16xf32>
    %171 = arith.mulf %169, %170 : vector<2x4x16xf32>
    %172 = arith.addf %158, %171 : vector<2x4x16xf32>
    %173 = vector.extract_strided_slice %163 {offsets = [0, 1], sizes = [2, 16], strides = [1, 1]} : vector<2x18xf32> to vector<2x16xf32>
    %c4_53 = arith.constant 4 : index
    %c0_54 = arith.constant 0 : index
    %c0_55 = arith.constant 0 : index
    %174 = vector.load %arg4[%c4_53, %c0_54, %c0_55] : memref<12x4x1xf32, #tpu.memory_space<vmem>>, vector<1x4x1xf32>
    %175 = vector.shape_cast %174 : vector<1x4x1xf32> to vector<4x1xf32>
    %176 = vector.shape_cast %175 : vector<4x1xf32> to vector<1x4x1xf32>
    %177 = vector.shape_cast %173 : vector<2x16xf32> to vector<2x1x16xf32>
    %178 = vector.broadcast %176 : vector<1x4x1xf32> to vector<2x4x16xf32>
    %179 = vector.broadcast %177 : vector<2x1x16xf32> to vector<2x4x16xf32>
    %180 = arith.mulf %178, %179 : vector<2x4x16xf32>
    %181 = arith.addf %172, %180 : vector<2x4x16xf32>
    %182 = vector.extract_strided_slice %163 {offsets = [0, 2], sizes = [2, 16], strides = [1, 1]} : vector<2x18xf32> to vector<2x16xf32>
    %c8_56 = arith.constant 8 : index
    %c0_57 = arith.constant 0 : index
    %c0_58 = arith.constant 0 : index
    %183 = vector.load %arg4[%c8_56, %c0_57, %c0_58] : memref<12x4x1xf32, #tpu.memory_space<vmem>>, vector<1x4x1xf32>
    %184 = vector.shape_cast %183 : vector<1x4x1xf32> to vector<4x1xf32>
    %185 = vector.shape_cast %184 : vector<4x1xf32> to vector<1x4x1xf32>
    %186 = vector.shape_cast %182 : vector<2x16xf32> to vector<2x1x16xf32>
    %187 = vector.broadcast %185 : vector<1x4x1xf32> to vector<2x4x16xf32>
    %188 = vector.broadcast %186 : vector<2x1x16xf32> to vector<2x4x16xf32>
    %189 = arith.mulf %187, %188 : vector<2x4x16xf32>
    %190 = arith.addf %181, %189 : vector<2x4x16xf32>
    %cst_59 = arith.constant 0.000000e+00 : f32
    %191 = vector.broadcast %cst_59 : f32 to vector<2x1xf32>
    %192 = vector.extract_strided_slice %157 {offsets = [0, 1, 0], sizes = [2, 1, 16], strides = [1, 1, 1]} : vector<2x4x16xf32> to vector<2x1x16xf32>
    %193 = vector.shape_cast %192 : vector<2x1x16xf32> to vector<2x16xf32>
    %cst_60 = arith.constant 0.000000e+00 : f32
    %194 = vector.broadcast %cst_60 : f32 to vector<2x1xf32>
    %195 = tpu.concatenate %191, %193, %194 in 1 : vector<2x1xf32>, vector<2x16xf32>, vector<2x1xf32> -> vector<2x18xf32>
    %196 = vector.extract_strided_slice %195 {offsets = [0, 0], sizes = [2, 16], strides = [1, 1]} : vector<2x18xf32> to vector<2x16xf32>
    %c1_61 = arith.constant 1 : index
    %c0_62 = arith.constant 0 : index
    %c0_63 = arith.constant 0 : index
    %197 = vector.load %arg4[%c1_61, %c0_62, %c0_63] : memref<12x4x1xf32, #tpu.memory_space<vmem>>, vector<1x4x1xf32>
    %198 = vector.shape_cast %197 : vector<1x4x1xf32> to vector<4x1xf32>
    %199 = vector.shape_cast %198 : vector<4x1xf32> to vector<1x4x1xf32>
    %200 = vector.shape_cast %196 : vector<2x16xf32> to vector<2x1x16xf32>
    %201 = vector.broadcast %199 : vector<1x4x1xf32> to vector<2x4x16xf32>
    %202 = vector.broadcast %200 : vector<2x1x16xf32> to vector<2x4x16xf32>
    %203 = arith.mulf %201, %202 : vector<2x4x16xf32>
    %204 = arith.addf %190, %203 : vector<2x4x16xf32>
    %205 = vector.extract_strided_slice %195 {offsets = [0, 1], sizes = [2, 16], strides = [1, 1]} : vector<2x18xf32> to vector<2x16xf32>
    %c5_64 = arith.constant 5 : index
    %c0_65 = arith.constant 0 : index
    %c0_66 = arith.constant 0 : index
    %206 = vector.load %arg4[%c5_64, %c0_65, %c0_66] : memref<12x4x1xf32, #tpu.memory_space<vmem>>, vector<1x4x1xf32>
    %207 = vector.shape_cast %206 : vector<1x4x1xf32> to vector<4x1xf32>
    %208 = vector.shape_cast %207 : vector<4x1xf32> to vector<1x4x1xf32>
    %209 = vector.shape_cast %205 : vector<2x16xf32> to vector<2x1x16xf32>
    %210 = vector.broadcast %208 : vector<1x4x1xf32> to vector<2x4x16xf32>
    %211 = vector.broadcast %209 : vector<2x1x16xf32> to vector<2x4x16xf32>
    %212 = arith.mulf %210, %211 : vector<2x4x16xf32>
    %213 = arith.addf %204, %212 : vector<2x4x16xf32>
    %214 = vector.extract_strided_slice %195 {offsets = [0, 2], sizes = [2, 16], strides = [1, 1]} : vector<2x18xf32> to vector<2x16xf32>
    %c9_67 = arith.constant 9 : index
    %c0_68 = arith.constant 0 : index
    %c0_69 = arith.constant 0 : index
    %215 = vector.load %arg4[%c9_67, %c0_68, %c0_69] : memref<12x4x1xf32, #tpu.memory_space<vmem>>, vector<1x4x1xf32>
    %216 = vector.shape_cast %215 : vector<1x4x1xf32> to vector<4x1xf32>
    %217 = vector.shape_cast %216 : vector<4x1xf32> to vector<1x4x1xf32>
    %218 = vector.shape_cast %214 : vector<2x16xf32> to vector<2x1x16xf32>
    %219 = vector.broadcast %217 : vector<1x4x1xf32> to vector<2x4x16xf32>
    %220 = vector.broadcast %218 : vector<2x1x16xf32> to vector<2x4x16xf32>
    %221 = arith.mulf %219, %220 : vector<2x4x16xf32>
    %222 = arith.addf %213, %221 : vector<2x4x16xf32>
    %cst_70 = arith.constant 0.000000e+00 : f32
    %223 = vector.broadcast %cst_70 : f32 to vector<2x1xf32>
    %224 = vector.extract_strided_slice %157 {offsets = [0, 2, 0], sizes = [2, 1, 16], strides = [1, 1, 1]} : vector<2x4x16xf32> to vector<2x1x16xf32>
    %225 = vector.shape_cast %224 : vector<2x1x16xf32> to vector<2x16xf32>
    %cst_71 = arith.constant 0.000000e+00 : f32
    %226 = vector.broadcast %cst_71 : f32 to vector<2x1xf32>
    %227 = tpu.concatenate %223, %225, %226 in 1 : vector<2x1xf32>, vector<2x16xf32>, vector<2x1xf32> -> vector<2x18xf32>
    %228 = vector.extract_strided_slice %227 {offsets = [0, 0], sizes = [2, 16], strides = [1, 1]} : vector<2x18xf32> to vector<2x16xf32>
    %c2_72 = arith.constant 2 : index
    %c0_73 = arith.constant 0 : index
    %c0_74 = arith.constant 0 : index
    %229 = vector.load %arg4[%c2_72, %c0_73, %c0_74] : memref<12x4x1xf32, #tpu.memory_space<vmem>>, vector<1x4x1xf32>
    %230 = vector.shape_cast %229 : vector<1x4x1xf32> to vector<4x1xf32>
    %231 = vector.shape_cast %230 : vector<4x1xf32> to vector<1x4x1xf32>
    %232 = vector.shape_cast %228 : vector<2x16xf32> to vector<2x1x16xf32>
    %233 = vector.broadcast %231 : vector<1x4x1xf32> to vector<2x4x16xf32>
    %234 = vector.broadcast %232 : vector<2x1x16xf32> to vector<2x4x16xf32>
    %235 = arith.mulf %233, %234 : vector<2x4x16xf32>
    %236 = arith.addf %222, %235 : vector<2x4x16xf32>
    %237 = vector.extract_strided_slice %227 {offsets = [0, 1], sizes = [2, 16], strides = [1, 1]} : vector<2x18xf32> to vector<2x16xf32>
    %c6_75 = arith.constant 6 : index
    %c0_76 = arith.constant 0 : index
    %c0_77 = arith.constant 0 : index
    %238 = vector.load %arg4[%c6_75, %c0_76, %c0_77] : memref<12x4x1xf32, #tpu.memory_space<vmem>>, vector<1x4x1xf32>
    %239 = vector.shape_cast %238 : vector<1x4x1xf32> to vector<4x1xf32>
    %240 = vector.shape_cast %239 : vector<4x1xf32> to vector<1x4x1xf32>
    %241 = vector.shape_cast %237 : vector<2x16xf32> to vector<2x1x16xf32>
    %242 = vector.broadcast %240 : vector<1x4x1xf32> to vector<2x4x16xf32>
    %243 = vector.broadcast %241 : vector<2x1x16xf32> to vector<2x4x16xf32>
    %244 = arith.mulf %242, %243 : vector<2x4x16xf32>
    %245 = arith.addf %236, %244 : vector<2x4x16xf32>
    %246 = vector.extract_strided_slice %227 {offsets = [0, 2], sizes = [2, 16], strides = [1, 1]} : vector<2x18xf32> to vector<2x16xf32>
    %c10_78 = arith.constant 10 : index
    %c0_79 = arith.constant 0 : index
    %c0_80 = arith.constant 0 : index
    %247 = vector.load %arg4[%c10_78, %c0_79, %c0_80] : memref<12x4x1xf32, #tpu.memory_space<vmem>>, vector<1x4x1xf32>
    %248 = vector.shape_cast %247 : vector<1x4x1xf32> to vector<4x1xf32>
    %249 = vector.shape_cast %248 : vector<4x1xf32> to vector<1x4x1xf32>
    %250 = vector.shape_cast %246 : vector<2x16xf32> to vector<2x1x16xf32>
    %251 = vector.broadcast %249 : vector<1x4x1xf32> to vector<2x4x16xf32>
    %252 = vector.broadcast %250 : vector<2x1x16xf32> to vector<2x4x16xf32>
    %253 = arith.mulf %251, %252 : vector<2x4x16xf32>
    %254 = arith.addf %245, %253 : vector<2x4x16xf32>
    %cst_81 = arith.constant 0.000000e+00 : f32
    %255 = vector.broadcast %cst_81 : f32 to vector<2x1xf32>
    %256 = vector.extract_strided_slice %157 {offsets = [0, 3, 0], sizes = [2, 1, 16], strides = [1, 1, 1]} : vector<2x4x16xf32> to vector<2x1x16xf32>
    %257 = vector.shape_cast %256 : vector<2x1x16xf32> to vector<2x16xf32>
    %cst_82 = arith.constant 0.000000e+00 : f32
    %258 = vector.broadcast %cst_82 : f32 to vector<2x1xf32>
    %259 = tpu.concatenate %255, %257, %258 in 1 : vector<2x1xf32>, vector<2x16xf32>, vector<2x1xf32> -> vector<2x18xf32>
    %260 = vector.extract_strided_slice %259 {offsets = [0, 0], sizes = [2, 16], strides = [1, 1]} : vector<2x18xf32> to vector<2x16xf32>
    %c3_83 = arith.constant 3 : index
    %c0_84 = arith.constant 0 : index
    %c0_85 = arith.constant 0 : index
    %261 = vector.load %arg4[%c3_83, %c0_84, %c0_85] : memref<12x4x1xf32, #tpu.memory_space<vmem>>, vector<1x4x1xf32>
    %262 = vector.shape_cast %261 : vector<1x4x1xf32> to vector<4x1xf32>
    %263 = vector.shape_cast %262 : vector<4x1xf32> to vector<1x4x1xf32>
    %264 = vector.shape_cast %260 : vector<2x16xf32> to vector<2x1x16xf32>
    %265 = vector.broadcast %263 : vector<1x4x1xf32> to vector<2x4x16xf32>
    %266 = vector.broadcast %264 : vector<2x1x16xf32> to vector<2x4x16xf32>
    %267 = arith.mulf %265, %266 : vector<2x4x16xf32>
    %268 = arith.addf %254, %267 : vector<2x4x16xf32>
    %269 = vector.extract_strided_slice %259 {offsets = [0, 1], sizes = [2, 16], strides = [1, 1]} : vector<2x18xf32> to vector<2x16xf32>
    %c7_86 = arith.constant 7 : index
    %c0_87 = arith.constant 0 : index
    %c0_88 = arith.constant 0 : index
    %270 = vector.load %arg4[%c7_86, %c0_87, %c0_88] : memref<12x4x1xf32, #tpu.memory_space<vmem>>, vector<1x4x1xf32>
    %271 = vector.shape_cast %270 : vector<1x4x1xf32> to vector<4x1xf32>
    %272 = vector.shape_cast %271 : vector<4x1xf32> to vector<1x4x1xf32>
    %273 = vector.shape_cast %269 : vector<2x16xf32> to vector<2x1x16xf32>
    %274 = vector.broadcast %272 : vector<1x4x1xf32> to vector<2x4x16xf32>
    %275 = vector.broadcast %273 : vector<2x1x16xf32> to vector<2x4x16xf32>
    %276 = arith.mulf %274, %275 : vector<2x4x16xf32>
    %277 = arith.addf %268, %276 : vector<2x4x16xf32>
    %278 = vector.extract_strided_slice %259 {offsets = [0, 2], sizes = [2, 16], strides = [1, 1]} : vector<2x18xf32> to vector<2x16xf32>
    %c11_89 = arith.constant 11 : index
    %c0_90 = arith.constant 0 : index
    %c0_91 = arith.constant 0 : index
    %279 = vector.load %arg4[%c11_89, %c0_90, %c0_91] : memref<12x4x1xf32, #tpu.memory_space<vmem>>, vector<1x4x1xf32>
    %280 = vector.shape_cast %279 : vector<1x4x1xf32> to vector<4x1xf32>
    %281 = vector.shape_cast %280 : vector<4x1xf32> to vector<1x4x1xf32>
    %282 = vector.shape_cast %278 : vector<2x16xf32> to vector<2x1x16xf32>
    %283 = vector.broadcast %281 : vector<1x4x1xf32> to vector<2x4x16xf32>
    %284 = vector.broadcast %282 : vector<2x1x16xf32> to vector<2x4x16xf32>
    %285 = arith.mulf %283, %284 : vector<2x4x16xf32>
    %286 = arith.addf %277, %285 : vector<2x4x16xf32>
    %cst_92 = arith.constant dense<0.000000e+00> : vector<4x16xf32>
    %287 = vector.multi_reduction <add>, %286, %cst_92 [0] : vector<2x4x16xf32> to vector<4x16xf32>
    %cst_93 = arith.constant dense<0.000000e+00> : vector<4xf32>
    %288 = vector.multi_reduction <add>, %287, %cst_93 [1] : vector<4x16xf32> to vector<4xf32>
    %289 = vector.shape_cast %288 : vector<4xf32> to vector<4x1xf32>
    %cst_94 = arith.constant 3.125000e-02 : f32
    %290 = vector.broadcast %cst_94 : f32 to vector<4x1xf32>
    %291 = arith.mulf %289, %290 : vector<4x1xf32>
    %292 = vector.shape_cast %291 : vector<4x1xf32> to vector<1x4x1xf32>
    %293 = vector.broadcast %292 : vector<1x4x1xf32> to vector<2x4x16xf32>
    %294 = arith.subf %286, %293 : vector<2x4x16xf32>
    %295 = arith.mulf %294, %294 : vector<2x4x16xf32>
    %cst_95 = arith.constant dense<0.000000e+00> : vector<4x16xf32>
    %296 = vector.multi_reduction <add>, %295, %cst_95 [0] : vector<2x4x16xf32> to vector<4x16xf32>
    %cst_96 = arith.constant dense<0.000000e+00> : vector<4xf32>
    %297 = vector.multi_reduction <add>, %296, %cst_96 [1] : vector<4x16xf32> to vector<4xf32>
    %298 = vector.shape_cast %297 : vector<4xf32> to vector<4x1xf32>
    %cst_97 = arith.constant 3.125000e-02 : f32
    %299 = vector.broadcast %cst_97 : f32 to vector<4x1xf32>
    %300 = arith.mulf %298, %299 : vector<4x1xf32>
    %c0_98 = arith.constant 0 : index
    %c0_99 = arith.constant 0 : index
    %301 = vector.load %arg5[%c0_98, %c0_99] : memref<4x1xf32, #tpu.memory_space<vmem>>, vector<4x1xf32>
    %cst_100 = arith.constant 9.99999974E-6 : f32
    %302 = vector.broadcast %cst_100 : f32 to vector<4x1xf32>
    %303 = arith.addf %300, %302 : vector<4x1xf32>
    %304 = math.rsqrt %303 : vector<4x1xf32>
    %305 = arith.mulf %301, %304 : vector<4x1xf32>
    %306 = vector.shape_cast %305 : vector<4x1xf32> to vector<1x4x1xf32>
    %307 = vector.broadcast %306 : vector<1x4x1xf32> to vector<2x4x16xf32>
    %308 = arith.mulf %294, %307 : vector<2x4x16xf32>
    %c0_101 = arith.constant 0 : index
    %c0_102 = arith.constant 0 : index
    %309 = vector.load %arg6[%c0_101, %c0_102] : memref<4x1xf32, #tpu.memory_space<vmem>>, vector<4x1xf32>
    %310 = vector.shape_cast %309 : vector<4x1xf32> to vector<1x4x1xf32>
    %311 = vector.broadcast %310 : vector<1x4x1xf32> to vector<2x4x16xf32>
    %312 = arith.addf %308, %311 : vector<2x4x16xf32>
    %313 = arith.addf %312, %0 : vector<2x4x16xf32>
    %cst_103 = arith.constant 0.000000e+00 : f32
    %314 = vector.broadcast %cst_103 : f32 to vector<2x4x16xf32>
    %315 = arith.maximumf %313, %314 : vector<2x4x16xf32>
    %c0_104 = arith.constant 0 : index
    %c0_105 = arith.constant 0 : index
    %c0_106 = arith.constant 0 : index
    %316 = vector.load %arg7[%c0_104, %c0_105, %c0_106] : memref<2x4x16xf32, #tpu.memory_space<vmem>>, vector<2x4x16xf32>
    tpu.vector_store %arg7[%c0_104, %c0_105, %c0_106], %315 {strides = array<i32>} : memref<2x4x16xf32, #tpu.memory_space<vmem>>, vector<2x4x16xf32>,
    return
  }
}

</mosaic_0001>

<llo_original>
// kernel: tpu_custom_call.1
$region0: #{tpu_custom_call.1}
  #allocation0 [shape = 'u32[]', space=smem, size = 0x4, offset = 0x4, fixed_abs, tag = 'smem constant byte address 0x4 - core index']
  #allocation1 [shape = 'u32[144,128]{1,0:T(1,128)}', space=vmem, size = 0x12000, scoped, tag = 'internal scratch']
  %s0 = inlined_call_operand.vmem [shape: f32[2,4,16], index: 0, kind: input, shape index: {}]
  %s1 = inlined_call_operand.vmem [shape: f32[12,4,1], index: 1, kind: input, shape index: {}]
  %s2 = inlined_call_operand.vmem [shape: f32[4,1], index: 2, kind: input, shape index: {}]
  %s3 = inlined_call_operand.vmem [shape: f32[4,1], index: 3, kind: input, shape index: {}]
  %s4 = inlined_call_operand.vmem [shape: f32[12,4,1], index: 4, kind: input, shape index: {}]
  %s5 = inlined_call_operand.vmem [shape: f32[4,1], index: 5, kind: input, shape index: {}]
  %s6 = inlined_call_operand.vmem [shape: f32[4,1], index: 6, kind: input, shape index: {}]
  %s7 = inlined_call_operand.hbm [shape: f32[2,4,16], index: 7, kind: output, shape index: {}]
  %s8 = sld [smem:[#allocation0]]
  $region38: #{tpu_custom_call.1} parent=0
    _
  %s10 = ssub.s32 1, %s8
  %s11 = scalar_select 0, %s10, %s8
  $region1: #{tpu_custom_call.1} parent=0
    #allocation2 [shape = 'u8[4096]{0}', space=vmem, size = 0x1000, scoped, tag = 'output window, operand 0, single buffered']
    #allocation3 [shape = 's32[1]{0}', space=sflag, size = 0x4, scoped, tag = 'scoped memory for tpu_custom_call.1']
    %12 = vsyncpa [#allocation3], 0
    // Predicated region
    $region2: #{tpu_custom_call.1} parent=1 // pred_check
      _
    $region3: #{tpu_custom_call.1} parent=1 // pred_check_branch
      %14 = sbr.rel (0) target = $region5
    $region4: #{tpu_custom_call.1} parent=1 // pred_region
      _
    $region5: #{tpu_custom_call.1} parent=1 // pred_fallthru
      _
    // Predicated region
    $region6: #{tpu_custom_call.1} parent=1 // pred_check
      _
    $region7: #{tpu_custom_call.1} parent=1 // pred_check_branch
      %16 = sbr.rel (0) target = $region9
    $region8: #{tpu_custom_call.1} parent=1 // pred_region
      _
    $region9: #{tpu_custom_call.1} parent=1 // pred_fallthru
      _
    // Predicated region
    $region10: #{tpu_custom_call.1} parent=1 // pred_check
      _
    $region11: #{tpu_custom_call.1} parent=1 // pred_check_branch
      %18 = sbr.rel (0) target = $region13
    $region12: #{tpu_custom_call.1} parent=1 // pred_region
      _
    $region13: #{tpu_custom_call.1} parent=1 // pred_fallthru
      _
    // Predicated region
    $region14: #{tpu_custom_call.1} parent=1 // pred_check
      _
    $region15: #{tpu_custom_call.1} parent=1 // pred_check_branch
      %20 = sbr.rel (0) target = $region17
    $region16: #{tpu_custom_call.1} parent=1 // pred_region
      _
    $region17: #{tpu_custom_call.1} parent=1 // pred_fallthru
      _
    // Predicated region
    $region18: #{tpu_custom_call.1} parent=1 // pred_check
      _
    $region19: #{tpu_custom_call.1} parent=1 // pred_check_branch
      %22 = sbr.rel (0) target = $region21
    $region20: #{tpu_custom_call.1} parent=1 // pred_region
      _
    $region21: #{tpu_custom_call.1} parent=1 // pred_fallthru
      _
    // Predicated region
    $region22: #{tpu_custom_call.1} parent=1 // pred_check
      _
    $region23: #{tpu_custom_call.1} parent=1 // pred_check_branch
      %24 = sbr.rel (0) target = $region25
    $region24: #{tpu_custom_call.1} parent=1 // pred_region
      _
    $region25: #{tpu_custom_call.1} parent=1 // pred_fallthru
      _
    // Predicated region
    $region26: #{tpu_custom_call.1} parent=1 // pred_check
      _
    $region27: #{tpu_custom_call.1} parent=1 // pred_check_branch
      %26 = sbr.rel (0) target = $region29
    $region28: #{tpu_custom_call.1} parent=1 // pred_region
      _
    $region29: #{tpu_custom_call.1} parent=1 // pred_fallthru
      _
    %v27 = vld [vmem:[%s0] sm:$0xf]
    %v28 = vld [vmem:[%s0 + $0x4] sm:$0xf]
    %v31 = vrot.slane %v28, 7
    %vm32 = vcmask 1041409
    %v33 = vsel %vm32, %v31, %v27
    %34 = vrot.lane.b32.xlu0 %v33, 1
    %v35 = vpop.permute.xlu0 %34
    %vm37 = vcmask 7168
    %v38 = vsel %vm37, 0.0, %v35
    %vm39 = vcmask 138240
    %v40 = vsel %vm39, %v38, 0.0
    %v41 = vld [vmem:[%s1] sm:$0xf]
    %v44 = vunpack.c.l.s4 1966171168
    %v45 = vunpack.c.0.s8 %v44
    %v46 = vlaneseq
    %v47 = vshrl.u32 %v46, 7
    %v48 = vsub.s32 %v45, %v47
    %v49 = vrot.slane %v40, %v48
    %v50 = vcombine.high %v49, %v49
    %v52 = vunpack.c.l.s4 1966171168
    %v53 = vunpack.c.0.s8 %v52
    %v54 = vlaneseq
    %v55 = vshrl.u32 %v54, 7
    %v56 = vsub.s32 %v53, %v55
    %v57 = vrot.slane %v49, %v56
    %v59 = vunpack.c.l.s4 1966171168
    %v60 = vunpack.c.0.s8 %v59
    %v61 = vlaneseq
    %v62 = vshrl.u32 %v61, 7
    %v63 = vsub.s32 %v60, %v62
    %v64 = vrot.slane %v50, %v63
    %66 = vset.pattern.permute.xlu0 0
    %67 = vperm.xlu0 %66, %v41
    %v68 = vpop.permute.xlu0 %67
    %v70 = vlaneseq
    %v71 = vshrl.u32 %v70, 7
    %v72 = vsub.s32 0, %v71
    %v73 = vrot.slane %v57, %v72
    %v74 = vlaneseq
    %v75 = vshrl.u32 %v74, 7
    %v76 = vsub.s32 0, %v75
    %v77 = vrot.slane %v64, %v76
    %v80 = vmul.f32 %v68, %v73
    %v81 = vmul.f32 %v68, %v77
    %v82 = vadd.f32 %v80, 0.0
    %v83 = vadd.f32 %v81, 0.0
    %s84 = scalar_lea.vmem %s1, 16
    %v85 = vld [vmem:[%s84] sm:$0xf]
    %87 = vset.pattern.permute.xlu0 0
    %88 = vperm.xlu0 %87, %v85
    %v89 = vpop.permute.xlu0 %88
    %v91 = vmul.f32 %v89, %v73
    %v92 = vmul.f32 %v89, %v77
    %95 = vrot.lane.b32.xlu0 %v91, 127
    %v96 = vpop.permute.xlu0 %95
    %97 = vrot.lane.b32.xlu0 %v92, 127
    %v98 = vpop.permute.xlu0 %97
    %v101 = vadd.f32 %v82, %v96
    %v102 = vadd.f32 %v83, %v98
    %s103 = scalar_lea.vmem %s1, 32
    %v104 = vld [vmem:[%s103] sm:$0xf]
    %106 = vset.pattern.permute.xlu0 0
    %107 = vperm.xlu0 %106, %v104
    %v108 = vpop.permute.xlu0 %107
    %v110 = vmul.f32 %v108, %v73
    %v111 = vmul.f32 %v108, %v77
    %114 = vrot.lane.b32.xlu0 %v110, 126
    %v115 = vpop.permute.xlu0 %114
    %116 = vrot.lane.b32.xlu0 %v111, 126
    %v117 = vpop.permute.xlu0 %116
    %v120 = vadd.f32 %v101, %v115
    %v121 = vadd.f32 %v102, %v117
    %v122 = vrot.slane %v27, 1
    %v123 = vsel %vm32, %v28, %v122
    %124 = vrot.lane.b32.xlu0 %v123, 1
    %v125 = vpop.permute.xlu0 %124
    %v127 = vsel %vm37, 0.0, %v125
    %v128 = vsel %vm39, %v127, 0.0
    %s129 = scalar_lea.vmem %s1, 4
    %v130 = vld [vmem:[%s129] sm:$0xf]
    %v133 = vunpack.c.l.s4 1966171168
    %v134 = vunpack.c.0.s8 %v133
    %v135 = vlaneseq
    %v136 = vshrl.u32 %v135, 7
    %v137 = vsub.s32 %v134, %v136
    %v138 = vrot.slane %v128, %v137
    %v139 = vcombine.high %v138, %v138
    %v141 = vunpack.c.l.s4 1966171168
    %v142 = vunpack.c.0.s8 %v141
    %v143 = vlaneseq
    %v144 = vshrl.u32 %v143, 7
    %v145 = vsub.s32 %v142, %v144
    %v146 = vrot.slane %v138, %v145
    %v148 = vunpack.c.l.s4 1966171168
    %v149 = vunpack.c.0.s8 %v148
    %v150 = vlaneseq
    %v151 = vshrl.u32 %v150, 7
    %v152 = vsub.s32 %v149, %v151
    %v153 = vrot.slane %v139, %v152
    %155 = vset.pattern.permute.xlu0 0
    %156 = vperm.xlu0 %155, %v130
    %v157 = vpop.permute.xlu0 %156
    %v159 = vlaneseq
    %v160 = vshrl.u32 %v159, 7
    %v161 = vsub.s32 0, %v160
    %v162 = vrot.slane %v146, %v161
    %v163 = vlaneseq
    %v164 = vshrl.u32 %v163, 7
    %v165 = vsub.s32 0, %v164
    %v166 = vrot.slane %v153, %v165
    %v169 = vmul.f32 %v157, %v162
    %v170 = vmul.f32 %v157, %v166
    %v171 = vadd.f32 %v120, %v169
    %v172 = vadd.f32 %v121, %v170
    %s173 = scalar_lea.vmem %s1, 20
    %v174 = vld [vmem:[%s173] sm:$0xf]
    %176 = vset.pattern.permute.xlu0 0
    %177 = vperm.xlu0 %176, %v174
    %v178 = vpop.permute.xlu0 %177
    %v180 = vmul.f32 %v178, %v162
    %v181 = vmul.f32 %v178, %v166
    %184 = vrot.lane.b32.xlu0 %v180, 127
    %v185 = vpop.permute.xlu0 %184
    %186 = vrot.lane.b32.xlu0 %v181, 127
    %v187 = vpop.permute.xlu0 %186
    %v190 = vadd.f32 %v171, %v185
    %v191 = vadd.f32 %v172, %v187
    %s192 = scalar_lea.vmem %s1, 36
    %v193 = vld [vmem:[%s192] sm:$0xf]
    %195 = vset.pattern.permute.xlu0 0
    %196 = vperm.xlu0 %195, %v193
    %v197 = vpop.permute.xlu0 %196
    %v199 = vmul.f32 %v197, %v162
    %v200 = vmul.f32 %v197, %v166
    %203 = vrot.lane.b32.xlu0 %v199, 126
    %v204 = vpop.permute.xlu0 %203
    %205 = vrot.lane.b32.xlu0 %v200, 126
    %v206 = vpop.permute.xlu0 %205
    %v209 = vadd.f32 %v190, %v204
    %v210 = vadd.f32 %v191, %v206
    %v211 = vrot.slane %v27, 2
    %v212 = vrot.slane %v28, 1
    %v213 = vsel %vm32, %v212, %v211
    %214 = vrot.lane.b32.xlu0 %v213, 1
    %v215 = vpop.permute.xlu0 %214
    %v217 = vsel %vm37, 0.0, %v215
    %v218 = vsel %vm39, %v217, 0.0
    %s219 = scalar_lea.vmem %s1, 8
    %v220 = vld [vmem:[%s219] sm:$0xf]
    %v223 = vunpack.c.l.s4 1966171168
    %v224 = vunpack.c.0.s8 %v223
    %v225 = vlaneseq
    %v226 = vshrl.u32 %v225, 7
    %v227 = vsub.s32 %v224, %v226
    %v228 = vrot.slane %v218, %v227
    %v229 = vcombine.high %v228, %v228
    %v231 = vunpack.c.l.s4 1966171168
    %v232 = vunpack.c.0.s8 %v231
    %v233 = vlaneseq
    %v234 = vshrl.u32 %v233, 7
    %v235 = vsub.s32 %v232, %v234
    %v236 = vrot.slane %v228, %v235
    %v238 = vunpack.c.l.s4 1966171168
    %v239 = vunpack.c.0.s8 %v238
    %v240 = vlaneseq
    %v241 = vshrl.u32 %v240, 7
    %v242 = vsub.s32 %v239, %v241
    %v243 = vrot.slane %v229, %v242
    %245 = vset.pattern.permute.xlu0 0
    %246 = vperm.xlu0 %245, %v220
    %v247 = vpop.permute.xlu0 %246
    %v249 = vlaneseq
    %v250 = vshrl.u32 %v249, 7
    %v251 = vsub.s32 0, %v250
    %v252 = vrot.slane %v236, %v251
    %v253 = vlaneseq
    %v254 = vshrl.u32 %v253, 7
    %v255 = vsub.s32 0, %v254
    %v256 = vrot.slane %v243, %v255
    %v259 = vmul.f32 %v247, %v252
    %v260 = vmul.f32 %v247, %v256
    %v261 = vadd.f32 %v209, %v259
    %v262 = vadd.f32 %v210, %v260
    %s263 = scalar_lea.vmem %s1, 24
    %v264 = vld [vmem:[%s263] sm:$0xf]
    %266 = vset.pattern.permute.xlu0 0
    %267 = vperm.xlu0 %266, %v264
    %v268 = vpop.permute.xlu0 %267
    %v270 = vmul.f32 %v268, %v252
    %v271 = vmul.f32 %v268, %v256
    %274 = vrot.lane.b32.xlu0 %v270, 127
    %v275 = vpop.permute.xlu0 %274
    %276 = vrot.lane.b32.xlu0 %v271, 127
    %v277 = vpop.permute.xlu0 %276
    %v280 = vadd.f32 %v261, %v275
    %v281 = vadd.f32 %v262, %v277
    %s282 = scalar_lea.vmem %s1, 40
    %v283 = vld [vmem:[%s282] sm:$0xf]
    %285 = vset.pattern.permute.xlu0 0
    %286 = vperm.xlu0 %285, %v283
    %v287 = vpop.permute.xlu0 %286
    %v289 = vmul.f32 %v287, %v252
    %v290 = vmul.f32 %v287, %v256
    %293 = vrot.lane.b32.xlu0 %v289, 126
    %v294 = vpop.permute.xlu0 %293
    %295 = vrot.lane.b32.xlu0 %v290, 126
    %v296 = vpop.permute.xlu0 %295
    %v299 = vadd.f32 %v280, %v294
    %v300 = vadd.f32 %v281, %v296
    %v301 = vrot.slane %v27, 3
    %v302 = vrot.slane %v28, 2
    %v303 = vsel %vm32, %v302, %v301
    %304 = vrot.lane.b32.xlu0 %v303, 1
    %v305 = vpop.permute.xlu0 %304
    %v307 = vsel %vm37, 0.0, %v305
    %v308 = vsel %vm39, %v307, 0.0
    %s309 = scalar_lea.vmem %s1, 12
    %v310 = vld [vmem:[%s309] sm:$0xf]
    %v313 = vunpack.c.l.s4 1966171168
    %v314 = vunpack.c.0.s8 %v313
    %v315 = vlaneseq
    %v316 = vshrl.u32 %v315, 7
    %v317 = vsub.s32 %v314, %v316
    %v318 = vrot.slane %v308, %v317
    %v319 = vcombine.high %v318, %v318
    %v321 = vunpack.c.l.s4 1966171168
    %v322 = vunpack.c.0.s8 %v321
    %v323 = vlaneseq
    %v324 = vshrl.u32 %v323, 7
    %v325 = vsub.s32 %v322, %v324
    %v326 = vrot.slane %v318, %v325
    %v328 = vunpack.c.l.s4 1966171168
    %v329 = vunpack.c.0.s8 %v328
    %v330 = vlaneseq
    %v331 = vshrl.u32 %v330, 7
    %v332 = vsub.s32 %v329, %v331
    %v333 = vrot.slane %v319, %v332
    %335 = vset.pattern.permute.xlu0 0
    %336 = vperm.xlu0 %335, %v310
    %v337 = vpop.permute.xlu0 %336
    %v339 = vlaneseq
    %v340 = vshrl.u32 %v339, 7
    %v341 = vsub.s32 0, %v340
    %v342 = vrot.slane %v326, %v341
    %v343 = vlaneseq
    %v344 = vshrl.u32 %v343, 7
    %v345 = vsub.s32 0, %v344
    %v346 = vrot.slane %v333, %v345
    %v349 = vmul.f32 %v337, %v342
    %v350 = vmul.f32 %v337, %v346
    %v351 = vadd.f32 %v299, %v349
    %v352 = vadd.f32 %v300, %v350
    %s353 = scalar_lea.vmem %s1, 28
    %v354 = vld [vmem:[%s353] sm:$0xf]
    %356 = vset.pattern.permute.xlu0 0
    %357 = vperm.xlu0 %356, %v354
    %v358 = vpop.permute.xlu0 %357
    %v360 = vmul.f32 %v358, %v342
    %v361 = vmul.f32 %v358, %v346
    %364 = vrot.lane.b32.xlu0 %v360, 127
    %v365 = vpop.permute.xlu0 %364
    %366 = vrot.lane.b32.xlu0 %v361, 127
    %v367 = vpop.permute.xlu0 %366
    %v370 = vadd.f32 %v351, %v365
    %v371 = vadd.f32 %v352, %v367
    %s372 = scalar_lea.vmem %s1, 44
    %v373 = vld [vmem:[%s372] sm:$0xf]
    %375 = vset.pattern.permute.xlu0 0
    %376 = vperm.xlu0 %375, %v373
    %v377 = vpop.permute.xlu0 %376
    %v379 = vmul.f32 %v377, %v342
    %v380 = vmul.f32 %v377, %v346
    %383 = vrot.lane.b32.xlu0 %v379, 126
    %v384 = vpop.permute.xlu0 %383
    %385 = vrot.lane.b32.xlu0 %v380, 126
    %v386 = vpop.permute.xlu0 %385
    %v389 = vadd.f32 %v370, %v384
    %v390 = vadd.f32 %v371, %v386
    %vm391 = vcmask 125952
    %v392 = vsel %vm391, %v389, 0.0
    %v393 = vsel %vm391, %v390, 0.0
    %v394 = vadd.f32 %v392, %v393
    %v395 = vsel %vm391, %v394, 0.0
    %396 = vadd.xlane.f32.xlu0 %v395
    %v397 = vpop.xlane.xlu0 %396
    %v398 = vmul.f32 %v397, 0.03125
    %v399 = vsub.f32 %v389, %v398
    %v400 = vsub.f32 %v390, %v398
    %v401 = vmul.f32 %v399, %v399
    %v402 = vmul.f32 %v400, %v400
    %v403 = vsel %vm391, %v401, 0.0
    %v404 = vsel %vm391, %v402, 0.0
    %v405 = vadd.f32 %v403, %v404
    %v406 = vsel %vm391, %v405, 0.0
    %407 = vadd.xlane.f32.xlu0 %v406
    %v408 = vpop.xlane.xlu0 %407
    %v409 = vmul.f32 %v408, 0.03125
    %v410 = vld [vmem:[%s2] sm:$0xf]
    %v411 = vadd.f32 %v409, 1e-05
    %v412 = vrsqrt.pop %v411
    %v413 = vmul.f32 %v410, %v412
    %415 = vset.pattern.permute.xlu0 0
    %416 = vperm.xlu0 %415, %v413
    %v417 = vpop.permute.xlu0 %416
    %v419 = vmul.f32 %v399, %v417
    %v420 = vmul.f32 %v400, %v417
    %v421 = vld [vmem:[%s3] sm:$0xf]
    %423 = vset.pattern.permute.xlu0 0
    %424 = vperm.xlu0 %423, %v421
    %v425 = vpop.permute.xlu0 %424
    %v427 = vadd.f32 %v419, %v425
    %v428 = vadd.f32 %v420, %v425
    %v429 = vmax.f32 %v427, 0.0
    %v430 = vmax.f32 %v428, 0.0
    %v433 = vrot.slane %v430, 7
    %v434 = vsel %vm32, %v433, %v429
    %435 = vrot.lane.b32.xlu0 %v434, 1
    %v436 = vpop.permute.xlu0 %435
    %v438 = vsel %vm37, 0.0, %v436
    %v439 = vsel %vm39, %v438, 0.0
    %v440 = vld [vmem:[%s4] sm:$0xf]
    %v443 = vunpack.c.l.s4 1966171168
    %v444 = vunpack.c.0.s8 %v443
    %v445 = vlaneseq
    %v446 = vshrl.u32 %v445, 7
    %v447 = vsub.s32 %v444, %v446
    %v448 = vrot.slane %v439, %v447
    %v449 = vcombine.high %v448, %v448
    %v451 = vunpack.c.l.s4 1966171168
    %v452 = vunpack.c.0.s8 %v451
    %v453 = vlaneseq
    %v454 = vshrl.u32 %v453, 7
    %v455 = vsub.s32 %v452, %v454
    %v456 = vrot.slane %v448, %v455
    %v458 = vunpack.c.l.s4 1966171168
    %v459 = vunpack.c.0.s8 %v458
    %v460 = vlaneseq
    %v461 = vshrl.u32 %v460, 7
    %v462 = vsub.s32 %v459, %v461
    %v463 = vrot.slane %v449, %v462
    %465 = vset.pattern.permute.xlu0 0
    %466 = vperm.xlu0 %465, %v440
    %v467 = vpop.permute.xlu0 %466
    %v469 = vlaneseq
    %v470 = vshrl.u32 %v469, 7
    %v471 = vsub.s32 0, %v470
    %v472 = vrot.slane %v456, %v471
    %v473 = vlaneseq
    %v474 = vshrl.u32 %v473, 7
    %v475 = vsub.s32 0, %v474
    %v476 = vrot.slane %v463, %v475
    %v479 = vmul.f32 %v467, %v472
    %v480 = vmul.f32 %v467, %v476
    %v481 = vadd.f32 %v479, 0.0
    %v482 = vadd.f32 %v480, 0.0
    %s483 = scalar_lea.vmem %s4, 16
    %v484 = vld [vmem:[%s483] sm:$0xf]
    %486 = vset.pattern.permute.xlu0 0
    %487 = vperm.xlu0 %486, %v484
    %v488 = vpop.permute.xlu0 %487
    %v490 = vmul.f32 %v488, %v472
    %v491 = vmul.f32 %v488, %v476
    %494 = vrot.lane.b32.xlu0 %v490, 127
    %v495 = vpop.permute.xlu0 %494
    %496 = vrot.lane.b32.xlu0 %v491, 127
    %v497 = vpop.permute.xlu0 %496
    %v500 = vadd.f32 %v481, %v495
    %v501 = vadd.f32 %v482, %v497
    %s502 = scalar_lea.vmem %s4, 32
    %v503 = vld [vmem:[%s502] sm:$0xf]
    %505 = vset.pattern.permute.xlu0 0
    %506 = vperm.xlu0 %505, %v503
    %v507 = vpop.permute.xlu0 %506
    %v509 = vmul.f32 %v507, %v472
    %v510 = vmul.f32 %v507, %v476
    %513 = vrot.lane.b32.xlu0 %v509, 126
    %v514 = vpop.permute.xlu0 %513
    %515 = vrot.lane.b32.xlu0 %v510, 126
    %v516 = vpop.permute.xlu0 %515
    %v519 = vadd.f32 %v500, %v514
    %v520 = vadd.f32 %v501, %v516
    %v521 = vrot.slane %v429, 1
    %v522 = vsel %vm32, %v430, %v521
    %523 = vrot.lane.b32.xlu0 %v522, 1
    %v524 = vpop.permute.xlu0 %523
    %v526 = vsel %vm37, 0.0, %v524
    %v527 = vsel %vm39, %v526, 0.0
    %s528 = scalar_lea.vmem %s4, 4
    %v529 = vld [vmem:[%s528] sm:$0xf]
    %v532 = vunpack.c.l.s4 1966171168
    %v533 = vunpack.c.0.s8 %v532
    %v534 = vlaneseq
    %v535 = vshrl.u32 %v534, 7
    %v536 = vsub.s32 %v533, %v535
    %v537 = vrot.slane %v527, %v536
    %v538 = vcombine.high %v537, %v537
    %v540 = vunpack.c.l.s4 1966171168
    %v541 = vunpack.c.0.s8 %v540
    %v542 = vlaneseq
    %v543 = vshrl.u32 %v542, 7
    %v544 = vsub.s32 %v541, %v543
    %v545 = vrot.slane %v537, %v544
    %v547 = vunpack.c.l.s4 1966171168
    %v548 = vunpack.c.0.s8 %v547
    %v549 = vlaneseq
    %v550 = vshrl.u32 %v549, 7
    %v551 = vsub.s32 %v548, %v550
    %v552 = vrot.slane %v538, %v551
    %554 = vset.pattern.permute.xlu0 0
    %555 = vperm.xlu0 %554, %v529
    %v556 = vpop.permute.xlu0 %555
    %v558 = vlaneseq
    %v559 = vshrl.u32 %v558, 7
    %v560 = vsub.s32 0, %v559
    %v561 = vrot.slane %v545, %v560
    %v562 = vlaneseq
    %v563 = vshrl.u32 %v562, 7
    %v564 = vsub.s32 0, %v563
    %v565 = vrot.slane %v552, %v564
    %v568 = vmul.f32 %v556, %v561
    %v569 = vmul.f32 %v556, %v565
    %v570 = vadd.f32 %v519, %v568
    %v571 = vadd.f32 %v520, %v569
    %s572 = scalar_lea.vmem %s4, 20
    %v573 = vld [vmem:[%s572] sm:$0xf]
    %575 = vset.pattern.permute.xlu0 0
    %576 = vperm.xlu0 %575, %v573
    %v577 = vpop.permute.xlu0 %576
    %v579 = vmul.f32 %v577, %v561
    %v580 = vmul.f32 %v577, %v565
    %583 = vrot.lane.b32.xlu0 %v579, 127
    %v584 = vpop.permute.xlu0 %583
    %585 = vrot.lane.b32.xlu0 %v580, 127
    %v586 = vpop.permute.xlu0 %585
    %v589 = vadd.f32 %v570, %v584
    %v590 = vadd.f32 %v571, %v586
    %s591 = scalar_lea.vmem %s4, 36
    %v592 = vld [vmem:[%s591] sm:$0xf]
    %594 = vset.pattern.permute.xlu0 0
    %595 = vperm.xlu0 %594, %v592
    %v596 = vpop.permute.xlu0 %595
    %v598 = vmul.f32 %v596, %v561
    %v599 = vmul.f32 %v596, %v565
    %602 = vrot.lane.b32.xlu0 %v598, 126
    %v603 = vpop.permute.xlu0 %602
    %604 = vrot.lane.b32.xlu0 %v599, 126
    %v605 = vpop.permute.xlu0 %604
    %v608 = vadd.f32 %v589, %v603
    %v609 = vadd.f32 %v590, %v605
    %v610 = vrot.slane %v429, 2
    %v611 = vrot.slane %v430, 1
    %v612 = vsel %vm32, %v611, %v610
    %613 = vrot.lane.b32.xlu0 %v612, 1
    %v614 = vpop.permute.xlu0 %613
    %v616 = vsel %vm37, 0.0, %v614
    %v617 = vsel %vm39, %v616, 0.0
    %s618 = scalar_lea.vmem %s4, 8
    %v619 = vld [vmem:[%s618] sm:$0xf]
    %v622 = vunpack.c.l.s4 1966171168
    %v623 = vunpack.c.0.s8 %v622
    %v624 = vlaneseq
    %v625 = vshrl.u32 %v624, 7
    %v626 = vsub.s32 %v623, %v625
    %v627 = vrot.slane %v617, %v626
    %v628 = vcombine.high %v627, %v627
    %v630 = vunpack.c.l.s4 1966171168
    %v631 = vunpack.c.0.s8 %v630
    %v632 = vlaneseq
    %v633 = vshrl.u32 %v632, 7
    %v634 = vsub.s32 %v631, %v633
    %v635 = vrot.slane %v627, %v634
    %v637 = vunpack.c.l.s4 1966171168
    %v638 = vunpack.c.0.s8 %v637
    %v639 = vlaneseq
    %v640 = vshrl.u32 %v639, 7
    %v641 = vsub.s32 %v638, %v640
    %v642 = vrot.slane %v628, %v641
    %644 = vset.pattern.permute.xlu0 0
    %645 = vperm.xlu0 %644, %v619
    %v646 = vpop.permute.xlu0 %645
    %v648 = vlaneseq
    %v649 = vshrl.u32 %v648, 7
    %v650 = vsub.s32 0, %v649
    %v651 = vrot.slane %v635, %v650
    %v652 = vlaneseq
    %v653 = vshrl.u32 %v652, 7
    %v654 = vsub.s32 0, %v653
    %v655 = vrot.slane %v642, %v654
    %v658 = vmul.f32 %v646, %v651
    %v659 = vmul.f32 %v646, %v655
    %v660 = vadd.f32 %v608, %v658
    %v661 = vadd.f32 %v609, %v659
    %s662 = scalar_lea.vmem %s4, 24
    %v663 = vld [vmem:[%s662] sm:$0xf]
    %665 = vset.pattern.permute.xlu0 0
    %666 = vperm.xlu0 %665, %v663
    %v667 = vpop.permute.xlu0 %666
    %v669 = vmul.f32 %v667, %v651
    %v670 = vmul.f32 %v667, %v655
    %673 = vrot.lane.b32.xlu0 %v669, 127
    %v674 = vpop.permute.xlu0 %673
    %675 = vrot.lane.b32.xlu0 %v670, 127
    %v676 = vpop.permute.xlu0 %675
    %v679 = vadd.f32 %v660, %v674
    %v680 = vadd.f32 %v661, %v676
    %s681 = scalar_lea.vmem %s4, 40
    %v682 = vld [vmem:[%s681] sm:$0xf]
    %684 = vset.pattern.permute.xlu0 0
    %685 = vperm.xlu0 %684, %v682
    %v686 = vpop.permute.xlu0 %685
    %v688 = vmul.f32 %v686, %v651
    %v689 = vmul.f32 %v686, %v655
    %692 = vrot.lane.b32.xlu0 %v688, 126
    %v693 = vpop.permute.xlu0 %692
    %694 = vrot.lane.b32.xlu0 %v689, 126
    %v695 = vpop.permute.xlu0 %694
    %v698 = vadd.f32 %v679, %v693
    %v699 = vadd.f32 %v680, %v695
    %v700 = vrot.slane %v429, 3
    %v701 = vrot.slane %v430, 2
    %v702 = vsel %vm32, %v701, %v700
    %703 = vrot.lane.b32.xlu0 %v702, 1
    %v704 = vpop.permute.xlu0 %703
    %v706 = vsel %vm37, 0.0, %v704
    %v707 = vsel %vm39, %v706, 0.0
    %s708 = scalar_lea.vmem %s4, 12
    %v709 = vld [vmem:[%s708] sm:$0xf]
    %v712 = vunpack.c.l.s4 1966171168
    %v713 = vunpack.c.0.s8 %v712
    %v714 = vlaneseq
    %v715 = vshrl.u32 %v714, 7
    %v716 = vsub.s32 %v713, %v715
    %v717 = vrot.slane %v707, %v716
    %v718 = vcombine.high %v717, %v717
    %v720 = vunpack.c.l.s4 1966171168
    %v721 = vunpack.c.0.s8 %v720
    %v722 = vlaneseq
    %v723 = vshrl.u32 %v722, 7
    %v724 = vsub.s32 %v721, %v723
    %v725 = vrot.slane %v717, %v724
    %v727 = vunpack.c.l.s4 1966171168
    %v728 = vunpack.c.0.s8 %v727
    %v729 = vlaneseq
    %v730 = vshrl.u32 %v729, 7
    %v731 = vsub.s32 %v728, %v730
    %v732 = vrot.slane %v718, %v731
    %734 = vset.pattern.permute.xlu0 0
    %735 = vperm.xlu0 %734, %v709
    %v736 = vpop.permute.xlu0 %735
    %v738 = vlaneseq
    %v739 = vshrl.u32 %v738, 7
    %v740 = vsub.s32 0, %v739
    %v741 = vrot.slane %v725, %v740
    %v742 = vlaneseq
    %v743 = vshrl.u32 %v742, 7
    %v744 = vsub.s32 0, %v743
    %v745 = vrot.slane %v732, %v744
    %v748 = vmul.f32 %v736, %v741
    %v749 = vmul.f32 %v736, %v745
    %v750 = vadd.f32 %v698, %v748
    %v751 = vadd.f32 %v699, %v749
    %s752 = scalar_lea.vmem %s4, 28
    %v753 = vld [vmem:[%s752] sm:$0xf]
    %755 = vset.pattern.permute.xlu0 0
    %756 = vperm.xlu0 %755, %v753
    %v757 = vpop.permute.xlu0 %756
    %v759 = vmul.f32 %v757, %v741
    %v760 = vmul.f32 %v757, %v745
    %763 = vrot.lane.b32.xlu0 %v759, 127
    %v764 = vpop.permute.xlu0 %763
    %765 = vrot.lane.b32.xlu0 %v760, 127
    %v766 = vpop.permute.xlu0 %765
    %v769 = vadd.f32 %v750, %v764
    %v770 = vadd.f32 %v751, %v766
    %s771 = scalar_lea.vmem %s4, 44
    %v772 = vld [vmem:[%s771] sm:$0xf]
    %774 = vset.pattern.permute.xlu0 0
    %775 = vperm.xlu0 %774, %v772
    %v776 = vpop.permute.xlu0 %775
    %v778 = vmul.f32 %v776, %v741
    %v779 = vmul.f32 %v776, %v745
    %782 = vrot.lane.b32.xlu0 %v778, 126
    %v783 = vpop.permute.xlu0 %782
    %784 = vrot.lane.b32.xlu0 %v779, 126
    %v785 = vpop.permute.xlu0 %784
    %v788 = vadd.f32 %v769, %v783
    %v789 = vadd.f32 %v770, %v785
    %v790 = vsel %vm391, %v788, 0.0
    %v791 = vsel %vm391, %v789, 0.0
    %v792 = vadd.f32 %v790, %v791
    %v793 = vsel %vm391, %v792, 0.0
    %794 = vadd.xlane.f32.xlu0 %v793
    %v795 = vpop.xlane.xlu0 %794
    %v796 = vmul.f32 %v795, 0.03125
    %v797 = vsub.f32 %v788, %v796
    %v798 = vsub.f32 %v789, %v796
    %v799 = vmul.f32 %v797, %v797
    %v800 = vmul.f32 %v798, %v798
    %v801 = vsel %vm391, %v799, 0.0
    %v802 = vsel %vm391, %v800, 0.0
    %v803 = vadd.f32 %v801, %v802
    %v804 = vsel %vm391, %v803, 0.0
    %805 = vadd.xlane.f32.xlu0 %v804
    %v806 = vpop.xlane.xlu0 %805
    %v807 = vmul.f32 %v806, 0.03125
    %v808 = vld [vmem:[%s5] sm:$0xf]
    %v809 = vadd.f32 %v807, 1e-05
    %v810 = vrsqrt.pop %v809
    %v811 = vmul.f32 %v808, %v810
    %813 = vset.pattern.permute.xlu0 0
    %814 = vperm.xlu0 %813, %v811
    %v815 = vpop.permute.xlu0 %814
    %v817 = vmul.f32 %v797, %v815
    %v818 = vmul.f32 %v798, %v815
    %v819 = vld [vmem:[%s6] sm:$0xf]
    %821 = vset.pattern.permute.xlu0 0
    %822 = vperm.xlu0 %821, %v819
    %v823 = vpop.permute.xlu0 %822
    %v825 = vadd.f32 %v817, %v823
    %v826 = vadd.f32 %v818, %v823
    %v827 = vadd.f32 %v825, %v27
    %v828 = vadd.f32 %v826, %v28
    %v829 = vmax.f32 %v827, 0.0
    %v830 = vmax.f32 %v828, 0.0
    %831 = vst.msk [vmem:[#allocation2] sm:$0xf] %vm391, %v829
    %832 = vst.msk [vmem:[#allocation2 + $0x4] sm:$0xf] %vm391, %v830
    // Predicated region
    $region30: #{tpu_custom_call.1} parent=1 // pred_check
      _
    $region31: #{tpu_custom_call.1} parent=1 // pred_check_branch
      %834 = sbr.rel (0) target = $region33
    $region32: #{tpu_custom_call.1} parent=1 // pred_region
      %s836 = ssub.s32 128, 128
      %837 = vsyncadd [#allocation3], %s836
      %s838 = sshll.u32 [#allocation2], 4
      %s839 = int_to_ptr.vmem [resolvable:$true] %s838
      %844 = dma.vmem_to_hbm [thread:$0]  %s839, 128, %s7, [#allocation3], 64, 64, 4
    $region33: #{tpu_custom_call.1} parent=1 // pred_fallthru
      _
    // Predicated region
    $region34: #{tpu_custom_call.1} parent=1 // pred_check
      _
    $region35: #{tpu_custom_call.1} parent=1 // pred_check_branch
      %846 = sbr.rel (0) target = $region37
    $region36: #{tpu_custom_call.1} parent=1 // pred_region
      %847 = dma.done [#allocation3], 128
    $region37: #{tpu_custom_call.1} parent=1 // pred_fallthru
      _
    %848 = vsyncpa [#allocation3], 1

</llo_original>
